<compile_context>
chip_gen: v6e
topology: v6e:2x2x1
jax: 0.10.0
libtpu: 0.0.40
codegen_flags: <defaults>
</compile_context>

<pallas_src>
import jax
import jax.numpy as jnp
from jax.experimental import pallas as pl
from jax.experimental.pallas import tpu as pltpu


# ---------------------------------------------------------------------------
# Fused forward kernel
# ---------------------------------------------------------------------------
def _encoder_kernel(tok_ref, emb_ref, w_ref, out_ref):
    """One-hot embedding gather + hoisted input projection + merged 2-RNN recurrence
    + FC(no bias) + LeakyReLU(0.2).

    tok_ref : (2*T*B, 1) int32, time-major: rows [0, T*B) = stream-1 ids (t*B + b),
              rows [T*B, 2*T*B) = stream-2 ids                                   [VMEM]
    emb_ref : (V, E) f32 embedding table                                         [VMEM]
    w_ref   : (2E + 2*LP + 8, LP) f32 packed weight slab (LP = 128 lanes):
                rows [0, 2E)            block-diag W_ih^T (lane-padded)
                rows [2E, 2E+LP)        block-diag W_hh^T (padded to LP x LP)
                rows [2E+LP, 2E+LP+8)   fused bias (row 0), rest zero
                rows [2E+LP+8, end)     FC weight^T (padded to LP x LP)          [VMEM]
    out_ref : (B, F) f32 output                                                  [VMEM]
    """
    V, E = emb_ref.shape
    B, F = out_ref.shape
    two_tb = tok_ref.shape[0]
    TB = two_tb // 2
    T = TB // B
    LP = w_ref.shape[1]           # lane-padded width (128)
    twoE = 2 * E

    # Static row offsets into the packed weight slab (all 8-sublane aligned).
    off_wih = 0
    off_whh = twoE
    off_b = twoE + LP
    off_fcw = off_b + 8

    # ---- Embedding gather for BOTH streams with ONE one-hot matmul (MXU) ----
    tok = tok_ref[...]                                                  # (2*T*B, 1) int32
    onehot = (jax.lax.broadcasted_iota(jnp.int32, (two_tb, V), 1) == tok
              ).astype(jnp.float32)                                     # (2*T*B, V)
    gathered = jnp.dot(onehot, emb_ref[...],
                       preferred_element_type=jnp.float32)              # (2*T*B, E)

    # ---- Hoisted input projection + bias for all timesteps ----
    e1 = gathered[:TB]                                                  # (T*B, E) stream 1
    e2 = gathered[TB:]                                                  # (T*B, E) stream 2
    wih1 = w_ref[off_wih:off_wih + E, :]                                # (E, LP)
    wih2 = w_ref[off_wih + E:off_wih + twoE, :]                         # (E, LP)
    bias = w_ref[off_b:off_b + 1, :]                                    # (1, LP)
    xproj = (jnp.dot(e1, wih1, preferred_element_type=jnp.float32)
             + jnp.dot(e2, wih2, preferred_element_type=jnp.float32)
             + bias)                                                    # (T*B, LP)

    # ---- Serial recurrence: h_t = tanh(xproj_t + h_{t-1} @ W_hh_bd) ----
    whh = w_ref[off_whh:off_whh + LP, :]                                # (LP, LP), loop-invariant
    h = jnp.zeros((B, LP), jnp.float32)
    for t in range(T):                                                  # T small & static
        x_t = xproj[t * B:(t + 1) * B, :]                               # (B, LP) static slice
        h = jnp.tanh(x_t + jnp.dot(h, whh, preferred_element_type=jnp.float32))

    # h is already [h1_last | h2_last | 0-pad] in lanes. FC (no bias) + LeakyReLU(0.2).
    fcw = w_ref[off_fcw:off_fcw + LP, :]                                # (LP, LP)
    y = jnp.dot(h, fcw, preferred_element_type=jnp.float32)             # (B, LP)
    y = y[:, :F]                                                        # (B, F)
    out_ref[...] = jnp.where(y >= 0.0, y, 0.2 * y)


def plain_encoder_forward(x1, x2, embed_w, packed_w, feature_dim, hidden=None):
    """x1, x2: (B, T) int token ids. Returns ((B, F) features, hidden) like the PyTorch module."""
    # TODO(synk): a non-None initial hidden state is ignored (zero-init), matching the hidden=None use;
    # the module's forward returns the *input* `hidden` unchanged, which we reproduce here.
    B, T = x1.shape
    V, E = embed_w.shape

    # Both streams, flattened time-major (row index = stream*T*B + t*B + b).
    tok = jnp.concatenate([
        jnp.transpose(x1).reshape(-1),
        jnp.transpose(x2).reshape(-1),
    ]).astype(jnp.int32)[:, None]                                       # (2*T*B, 1)

    out = pl.pallas_call(
        _encoder_kernel,
        out_shape=jax.ShapeDtypeStruct((B, feature_dim), jnp.float32),
        in_specs=[
            pl.BlockSpec(memory_space=pltpu.MemorySpace.VMEM),  # token ids  (2*T*B, 1) int32
            pl.BlockSpec(memory_space=pltpu.MemorySpace.VMEM),  # embedding  (V, E) f32
            pl.BlockSpec(memory_space=pltpu.MemorySpace.VMEM),  # packed weight slab
        ],
        out_specs=pl.BlockSpec(memory_space=pltpu.MemorySpace.VMEM),
    )(tok, embed_w.astype(jnp.float32), packed_w)
    return out, hidden


# ---------------------------------------------------------------------------
# Offline parameter packing (weight-only transform, done once)
# ---------------------------------------------------------------------------
def pack_params(embed_size, hidden_size, feature_dim, rnn1, rnn2, fc_w, lane_pad=128):
    """Pack [block-diag W_ih^T | block-diag W_hh^T | fused bias | FC^T] into one (R, 128) slab."""
    E, H = embed_size, hidden_size
    assert 2 * H <= lane_pad and feature_dim <= lane_pad
    w_ih1, w_hh1, b_ih1, b_hh1 = rnn1
    w_ih2, w_hh2, b_ih2, b_hh2 = rnn2

    wih = jnp.zeros((2 * E, lane_pad), jnp.float32)
    wih = wih.at[0:E, 0:H].set(w_ih1.T)
    wih = wih.at[E:2 * E, H:2 * H].set(w_ih2.T)

    whh = jnp.zeros((lane_pad, lane_pad), jnp.float32)
    whh = whh.at[0:H, 0:H].set(w_hh1.T)
    whh = whh.at[H:2 * H, H:2 * H].set(w_hh2.T)

    bias = jnp.zeros((8, lane_pad), jnp.float32)
    bias = bias.at[0, 0:H].set(b_ih1 + b_hh1)
    bias = bias.at[0, H:2 * H].set(b_ih2 + b_hh2)

    fcw = jnp.zeros((lane_pad, lane_pad), jnp.float32)
    fcw = fcw.at[0:2 * H, 0:feature_dim].set(fc_w.T)

    return jnp.concatenate([wih, whh, bias, fcw], axis=0)   # (2E + 2*lane_pad + 8, lane_pad)


# ---------------------------------------------------------------------------
# Pure-JAX reference (mirrors the PyTorch module) for a correctness check
# ---------------------------------------------------------------------------
def _rnn_ref(emb_bte, w_ih, w_hh, b_ih, b_hh):
    B = emb_bte.shape[0]
    H = w_hh.shape[0]

    def step(h, x_t):
        return jnp.tanh(x_t @ w_ih.T + b_ih + h @ w_hh.T + b_hh), None

    h0 = jnp.zeros((B, H), jnp.float32)
    h_last, _ = jax.lax.scan(step, h0, jnp.transpose(emb_bte, (1, 0, 2)))
    return h_last


def _forward_ref(x1, x2, embed_w, rnn1, rnn2, fc_w):
    h1 = _rnn_ref(embed_w[x1], *rnn1)
    h2 = _rnn_ref(embed_w[x2], *rnn2)
    y = jnp.concatenate([h1, h2], axis=1) @ fc_w.T
    return jnp.where(y >= 0.0, y, 0.2 * y)


if __name__ == "__main__":
    # Small, module-consistent sizes
    vocab_size = 50
    embed_size = 32
    hidden_size = 32
    max_len = 8            # T
    feature_base_dim = 16
    B, T = 2, max_len

    key = jax.random.PRNGKey(0)
    keys = jax.random.split(key, 8)

    # Deterministic parameter init (matches init shapes of the PyTorch module)
    embed_w = jax.random.uniform(keys[0], (vocab_size, embed_size), jnp.float32, -0.1, 0.1)

    def make_rnn_params(k):
        k1, k2, k3, k4 = jax.random.split(k, 4)
        bound = 1.0 / (hidden_size ** 0.5)
        w_ih = jax.random.uniform(k1, (hidden_size, embed_size), jnp.float32, -bound, bound)
        w_hh = jax.random.uniform(k2, (hidden_size, hidden_size), jnp.float32, -bound, bound)
        b_ih = jax.random.uniform(k3, (hidden_size,), jnp.float32, -bound, bound)
        b_hh = jax.random.uniform(k4, (hidden_size,), jnp.float32, -bound, bound)
        return w_ih, w_hh, b_ih, b_hh

    rnn1 = make_rnn_params(keys[1])
    rnn2 = make_rnn_params(keys[2])

    fc_w = jax.random.uniform(keys[3], (feature_base_dim, 2 * hidden_size),
                              jnp.float32, -0.1, 0.1)   # nn.Linear weight (F, 2H), bias=False

    packed_w = pack_params(embed_size, hidden_size, feature_base_dim, rnn1, rnn2, fc_w)

    x1 = jax.random.randint(keys[4], (B, T), 0, vocab_size, dtype=jnp.int32)
    x2 = jax.random.randint(keys[5], (B, T), 0, vocab_size, dtype=jnp.int32)

    out, hidden = plain_encoder_forward(x1, x2, embed_w, packed_w, feature_base_dim)
    out = jax.block_until_ready(out)

    ref = _forward_ref(x1, x2, embed_w, rnn1, rnn2, fc_w)
    assert out.shape == (B, feature_base_dim)
    assert jnp.allclose(out, ref, atol=5e-5, rtol=1e-5), "Pallas output mismatch vs reference"

    print("KERNEL_OK")
</pallas_src>

<mosaic_0001>
module attributes {stable_mosaic.version = 11 : i64} {
  func.func @_encoder_kernel(%arg0: memref<32x1xi32, #tpu.memory_space<vmem>>, %arg1: memref<50x32xf32, #tpu.memory_space<vmem>>, %arg2: memref<328x128xf32, #tpu.memory_space<vmem>>, %arg3: memref<2x16xf32, #tpu.memory_space<vmem>>) attributes {dimension_semantics = [], scalar_prefetch = 0 : i64, scratch_operands = 0 : i64, tpu.core_type = #tpu.core_type<tc>} {
    %c0 = arith.constant 0 : index
    %c0_0 = arith.constant 0 : index
    %0 = vector.load %arg0[%c0, %c0_0] : memref<32x1xi32, #tpu.memory_space<vmem>>, vector<32x1xi32>
    %1 = tpu.iota {dimensions = array<i32: 1>} : vector<32x50xi32>
    %2 = vector.broadcast %0 : vector<32x1xi32> to vector<32x50xi32>
    %3 = arith.cmpi eq, %1, %2 : vector<32x50xi32>
    %4 = arith.extui %3 : vector<32x50xi1> to vector<32x50xi32>
    %5 = arith.sitofp %4 : vector<32x50xi32> to vector<32x50xf32>
    %c0_1 = arith.constant 0 : index
    %c0_2 = arith.constant 0 : index
    %6 = vector.load %arg1[%c0_1, %c0_2] : memref<50x32xf32, #tpu.memory_space<vmem>>, vector<50x32xf32>
    %cst = arith.constant dense<0.000000e+00> : vector<32x32xf32>
    %7 = tpu.matmul %5, %6, %cst {dimension_numbers = #tpu.dot_dimension_numbers<[1], [0], [0], [1], [0, 0, 1, 1], [], []>} : vector<32x50xf32>, vector<50x32xf32>, vector<32x32xf32> -> vector<32x32xf32>
    %8 = vector.extract_strided_slice %7 {offsets = [0, 0], sizes = [16, 32], strides = [1, 1]} : vector<32x32xf32> to vector<16x32xf32>
    %9 = vector.extract_strided_slice %7 {offsets = [16, 0], sizes = [16, 32], strides = [1, 1]} : vector<32x32xf32> to vector<16x32xf32>
    %c0_3 = arith.constant 0 : index
    %c0_4 = arith.constant 0 : index
    %10 = vector.load %arg2[%c0_3, %c0_4] : memref<328x128xf32, #tpu.memory_space<vmem>>, vector<32x128xf32>
    %c32 = arith.constant 32 : index
    %c0_5 = arith.constant 0 : index
    %11 = vector.load %arg2[%c32, %c0_5] : memref<328x128xf32, #tpu.memory_space<vmem>>, vector<32x128xf32>
    %c192 = arith.constant 192 : index
    %c0_6 = arith.constant 0 : index
    %12 = vector.load %arg2[%c192, %c0_6] : memref<328x128xf32, #tpu.memory_space<vmem>>, vector<1x128xf32>
    %cst_7 = arith.constant dense<0.000000e+00> : vector<16x128xf32>
    %13 = tpu.matmul %8, %10, %cst_7 {dimension_numbers = #tpu.dot_dimension_numbers<[1], [0], [0], [1], [0, 0, 1, 1], [], []>} : vector<16x32xf32>, vector<32x128xf32>, vector<16x128xf32> -> vector<16x128xf32>
    %cst_8 = arith.constant dense<0.000000e+00> : vector<16x128xf32>
    %14 = tpu.matmul %9, %11, %cst_8 {dimension_numbers = #tpu.dot_dimension_numbers<[1], [0], [0], [1], [0, 0, 1, 1], [], []>} : vector<16x32xf32>, vector<32x128xf32>, vector<16x128xf32> -> vector<16x128xf32>
    %15 = arith.addf %13, %14 : vector<16x128xf32>
    %16 = vector.broadcast %12 : vector<1x128xf32> to vector<16x128xf32>
    %17 = arith.addf %15, %16 : vector<16x128xf32>
    %c64 = arith.constant 64 : index
    %c0_9 = arith.constant 0 : index
    %18 = vector.load %arg2[%c64, %c0_9] : memref<328x128xf32, #tpu.memory_space<vmem>>, vector<128x128xf32>
    %cst_10 = arith.constant 0.000000e+00 : f32
    %19 = vector.broadcast %cst_10 : f32 to vector<2x128xf32>
    %20 = vector.extract_strided_slice %17 {offsets = [0, 0], sizes = [2, 128], strides = [1, 1]} : vector<16x128xf32> to vector<2x128xf32>
    %cst_11 = arith.constant dense<0.000000e+00> : vector<2x128xf32>
    %21 = tpu.matmul %19, %18, %cst_11 {dimension_numbers = #tpu.dot_dimension_numbers<[1], [0], [0], [1], [0, 0, 1, 1], [], []>} : vector<2x128xf32>, vector<128x128xf32>, vector<2x128xf32> -> vector<2x128xf32>
    %22 = arith.addf %20, %21 : vector<2x128xf32>
    %23 = math.tanh %22 : vector<2x128xf32>
    %24 = vector.extract_strided_slice %17 {offsets = [2, 0], sizes = [2, 128], strides = [1, 1]} : vector<16x128xf32> to vector<2x128xf32>
    %cst_12 = arith.constant dense<0.000000e+00> : vector<2x128xf32>
    %25 = tpu.matmul %23, %18, %cst_12 {dimension_numbers = #tpu.dot_dimension_numbers<[1], [0], [0], [1], [0, 0, 1, 1], [], []>} : vector<2x128xf32>, vector<128x128xf32>, vector<2x128xf32> -> vector<2x128xf32>
    %26 = arith.addf %24, %25 : vector<2x128xf32>
    %27 = math.tanh %26 : vector<2x128xf32>
    %28 = vector.extract_strided_slice %17 {offsets = [4, 0], sizes = [2, 128], strides = [1, 1]} : vector<16x128xf32> to vector<2x128xf32>
    %cst_13 = arith.constant dense<0.000000e+00> : vector<2x128xf32>
    %29 = tpu.matmul %27, %18, %cst_13 {dimension_numbers = #tpu.dot_dimension_numbers<[1], [0], [0], [1], [0, 0, 1, 1], [], []>} : vector<2x128xf32>, vector<128x128xf32>, vector<2x128xf32> -> vector<2x128xf32>
    %30 = arith.addf %28, %29 : vector<2x128xf32>
    %31 = math.tanh %30 : vector<2x128xf32>
    %32 = vector.extract_strided_slice %17 {offsets = [6, 0], sizes = [2, 128], strides = [1, 1]} : vector<16x128xf32> to vector<2x128xf32>
    %cst_14 = arith.constant dense<0.000000e+00> : vector<2x128xf32>
    %33 = tpu.matmul %31, %18, %cst_14 {dimension_numbers = #tpu.dot_dimension_numbers<[1], [0], [0], [1], [0, 0, 1, 1], [], []>} : vector<2x128xf32>, vector<128x128xf32>, vector<2x128xf32> -> vector<2x128xf32>
    %34 = arith.addf %32, %33 : vector<2x128xf32>
    %35 = math.tanh %34 : vector<2x128xf32>
    %36 = vector.extract_strided_slice %17 {offsets = [8, 0], sizes = [2, 128], strides = [1, 1]} : vector<16x128xf32> to vector<2x128xf32>
    %cst_15 = arith.constant dense<0.000000e+00> : vector<2x128xf32>
    %37 = tpu.matmul %35, %18, %cst_15 {dimension_numbers = #tpu.dot_dimension_numbers<[1], [0], [0], [1], [0, 0, 1, 1], [], []>} : vector<2x128xf32>, vector<128x128xf32>, vector<2x128xf32> -> vector<2x128xf32>
    %38 = arith.addf %36, %37 : vector<2x128xf32>
    %39 = math.tanh %38 : vector<2x128xf32>
    %40 = vector.extract_strided_slice %17 {offsets = [10, 0], sizes = [2, 128], strides = [1, 1]} : vector<16x128xf32> to vector<2x128xf32>
    %cst_16 = arith.constant dense<0.000000e+00> : vector<2x128xf32>
    %41 = tpu.matmul %39, %18, %cst_16 {dimension_numbers = #tpu.dot_dimension_numbers<[1], [0], [0], [1], [0, 0, 1, 1], [], []>} : vector<2x128xf32>, vector<128x128xf32>, vector<2x128xf32> -> vector<2x128xf32>
    %42 = arith.addf %40, %41 : vector<2x128xf32>
    %43 = math.tanh %42 : vector<2x128xf32>
    %44 = vector.extract_strided_slice %17 {offsets = [12, 0], sizes = [2, 128], strides = [1, 1]} : vector<16x128xf32> to vector<2x128xf32>
    %cst_17 = arith.constant dense<0.000000e+00> : vector<2x128xf32>
    %45 = tpu.matmul %43, %18, %cst_17 {dimension_numbers = #tpu.dot_dimension_numbers<[1], [0], [0], [1], [0, 0, 1, 1], [], []>} : vector<2x128xf32>, vector<128x128xf32>, vector<2x128xf32> -> vector<2x128xf32>
    %46 = arith.addf %44, %45 : vector<2x128xf32>
    %47 = math.tanh %46 : vector<2x128xf32>
    %48 = vector.extract_strided_slice %17 {offsets = [14, 0], sizes = [2, 128], strides = [1, 1]} : vector<16x128xf32> to vector<2x128xf32>
    %cst_18 = arith.constant dense<0.000000e+00> : vector<2x128xf32>
    %49 = tpu.matmul %47, %18, %cst_18 {dimension_numbers = #tpu.dot_dimension_numbers<[1], [0], [0], [1], [0, 0, 1, 1], [], []>} : vector<2x128xf32>, vector<128x128xf32>, vector<2x128xf32> -> vector<2x128xf32>
    %50 = arith.addf %48, %49 : vector<2x128xf32>
    %51 = math.tanh %50 : vector<2x128xf32>
    %c200 = arith.constant 200 : index
    %c0_19 = arith.constant 0 : index
    %52 = vector.load %arg2[%c200, %c0_19] : memref<328x128xf32, #tpu.memory_space<vmem>>, vector<128x128xf32>
    %cst_20 = arith.constant dense<0.000000e+00> : vector<2x128xf32>
    %53 = tpu.matmul %51, %52, %cst_20 {dimension_numbers = #tpu.dot_dimension_numbers<[1], [0], [0], [1], [0, 0, 1, 1], [], []>} : vector<2x128xf32>, vector<128x128xf32>, vector<2x128xf32> -> vector<2x128xf32>
    %54 = vector.extract_strided_slice %53 {offsets = [0, 0], sizes = [2, 16], strides = [1, 1]} : vector<2x128xf32> to vector<2x16xf32>
    %cst_21 = arith.constant 0.000000e+00 : f32
    %55 = vector.broadcast %cst_21 : f32 to vector<2x16xf32>
    %56 = arith.cmpf oge, %54, %55 : vector<2x16xf32>
    %cst_22 = arith.constant 2.000000e-01 : f32
    %57 = vector.broadcast %cst_22 : f32 to vector<2x16xf32>
    %58 = arith.mulf %57, %54 : vector<2x16xf32>
    %59 = arith.select %56, %54, %58 : vector<2x16xi1>, vector<2x16xf32>
    %c0_23 = arith.constant 0 : index
    %c0_24 = arith.constant 0 : index
    %60 = vector.load %arg3[%c0_23, %c0_24] : memref<2x16xf32, #tpu.memory_space<vmem>>, vector<2x16xf32>
    tpu.vector_store %arg3[%c0_23, %c0_24], %59 {strides = array<i32>} : memref<2x16xf32, #tpu.memory_space<vmem>>, vector<2x16xf32>,
    return
  }
}

</mosaic_0001>

<llo_original>
// kernel: tpu_custom_call.1
$region0: #{tpu_custom_call.1}
  #allocation0 [shape = 'u32[]', space=smem, size = 0x4, offset = 0x4, fixed_abs, tag = 'smem constant byte address 0x4 - core index']
  #allocation1 [shape = 'u32[144,128]{1,0:T(1,128)}', space=vmem, size = 0x12000, scoped, tag = 'internal scratch']
  %s0 = inlined_call_operand.vmem [shape: s32[32,1], index: 0, kind: input, shape index: {}]
  %s1 = inlined_call_operand.vmem [shape: f32[50,32], index: 1, kind: input, shape index: {}]
  %s2 = inlined_call_operand.hbm [shape: f32[328,128], index: 2, kind: input, shape index: {}]
  %s3 = inlined_call_operand.hbm [shape: f32[2,16], index: 3, kind: output, shape index: {}]
  %s4 = sld [smem:[#allocation0]]
  $region26: #{tpu_custom_call.1} parent=0
    _
  %s6 = ssub.s32 1, %s4
  %s7 = scalar_select 0, %s6, %s4
  $region1: #{tpu_custom_call.1} parent=0
    #allocation2 [shape = 'u8[167936]{0}', space=vmem, size = 0x29000, scoped, tag = 'input window, operand 2, single buffered']
    #allocation3 [shape = 's32[1]{0}', space=sflag, size = 0x4, scoped, tag = 'scoped memory for tpu_custom_call.1']
    #allocation4 [shape = 's32[1]{0}', space=sflag, size = 0x4, scoped, tag = 'scoped memory for tpu_custom_call.1']
    #allocation5 [shape = 'u8[1024]{0}', space=vmem, size = 0x400, scoped, tag = 'output window, operand 0, single buffered']
    %8 = vsyncpa [#allocation3], 0
    %9 = vsyncpa [#allocation4], 0
    // Predicated region
    $region2: #{tpu_custom_call.1} parent=1 // pred_check
      _
    $region3: #{tpu_custom_call.1} parent=1 // pred_check_branch
      %11 = sbr.rel (0) target = $region5
    $region4: #{tpu_custom_call.1} parent=1 // pred_region
      _
    $region5: #{tpu_custom_call.1} parent=1 // pred_fallthru
      _
    // Predicated region
    $region6: #{tpu_custom_call.1} parent=1 // pred_check
      _
    $region7: #{tpu_custom_call.1} parent=1 // pred_check_branch
      %13 = sbr.rel (0) target = $region9
    $region8: #{tpu_custom_call.1} parent=1 // pred_region
      _
    $region9: #{tpu_custom_call.1} parent=1 // pred_fallthru
      _
    // Predicated region
    $region10: #{tpu_custom_call.1} parent=1 // pred_check
      _
    $region11: #{tpu_custom_call.1} parent=1 // pred_check_branch
      %15 = sbr.rel (0) target = $region13
    $region12: #{tpu_custom_call.1} parent=1 // pred_region
      %s17 = ssub.s32 5248, 5248
      %18 = vsyncadd [#allocation3], %s17
      %s19 = sshll.u32 [#allocation2], 4
      %s20 = int_to_ptr.vmem [resolvable:$true] %s19
      %25 = dma.hbm_to_vmem [thread:$0]  %s2, 5248, %s20, [#allocation3], 128, 128, 8
    $region13: #{tpu_custom_call.1} parent=1 // pred_fallthru
      _
    // Predicated region
    $region14: #{tpu_custom_call.1} parent=1 // pred_check
      _
    $region15: #{tpu_custom_call.1} parent=1 // pred_check_branch
      %27 = sbr.rel (0) target = $region17
    $region16: #{tpu_custom_call.1} parent=1 // pred_region
      %28 = dma.done [#allocation3], 5248
    $region17: #{tpu_custom_call.1} parent=1 // pred_fallthru
      _
    %v29 = vld [vmem:[%s0] sm:$0xff]
    %v30 = vld [vmem:[%s0 + $0x8] sm:$0xff]
    %v31 = vld [vmem:[%s0 + $0x10] sm:$0xff]
    %v32 = vld [vmem:[%s0 + $0x18] sm:$0xff]
    %v33 = vlaneseq
    %v34 = vand.u32 %v33, 127
    %35 = vset.pattern.permute.xlu0 0
    %36 = vperm.xlu0 %35, %v29
    %v37 = vpop.permute.xlu0 %36
    %38 = vset.pattern.permute.xlu0 0
    %39 = vperm.xlu0 %38, %v30
    %v40 = vpop.permute.xlu0 %39
    %41 = vset.pattern.permute.xlu0 0
    %42 = vperm.xlu0 %41, %v31
    %v43 = vpop.permute.xlu0 %42
    %44 = vset.pattern.permute.xlu0 0
    %45 = vperm.xlu0 %44, %v32
    %v46 = vpop.permute.xlu0 %45
    %vm47 = vcmp.eq.s32.totalorder %v34, %v37
    %vm48 = vcmp.eq.s32.totalorder %v34, %v40
    %vm49 = vcmp.eq.s32.totalorder %v34, %v43
    %vm50 = vcmp.eq.s32.totalorder %v34, %v46
    %v51 = vsel %vm47, 1, 0
    %v52 = vsel %vm48, 1, 0
    %v53 = vsel %vm49, 1, 0
    %v54 = vsel %vm50, 1, 0
    %v55 = vcvt.s32.f32 %v51
    %v56 = vcvt.s32.f32 %v52
    %v57 = vcvt.s32.f32 %v53
    %v58 = vcvt.s32.f32 %v54
    %v59 = vld [vmem:[%s1] sm:$0xff]
    %v60 = vld [vmem:[%s1 + $0x8] sm:$0xff]
    %v61 = vld [vmem:[%s1 + $0x10] sm:$0xff]
    %v62 = vld [vmem:[%s1 + $0x18] sm:$0xff]
    %v63 = vld [vmem:[%s1 + $0x20] sm:$0xff]
    %v64 = vld [vmem:[%s1 + $0x28] sm:$0xff]
    %v65 = vld [vmem:[%s1 + $0x30] sm:$0x3]
    %vm66 = vcmask 408576
    %v68 = vsel %vm66, %v55, 0
    %v71 = vsel %vm66, %v56, 0
    %v74 = vsel %vm66, %v57, 0
    %v77 = vsel %vm66, %v58, 0
    %vm79 = vcmask 1041408
    %v81 = vsel %vm79, %v65, 0
    %83 = vmatprep.subr.mxu0 0.0
    %84 = vmatpush1.msra.mxu0 0.0
    %85 = vmatprep.subr.mxu0 0.0
    %86 = vmatpush1.msra.mxu0 0.0
    %87 = vmatprep.subr.mxu0 0.0
    %88 = vmatpush1.msra.mxu0 0.0
    %89 = vmatprep.subr.mxu0 0.0
    %90 = vmatpush1.msra.mxu0 0.0
    %91 = vmatprep.subr.mxu0 0.0
    %92 = vmatpush1.msra.mxu0 0.0
    %93 = vmatprep.subr.mxu0 0.0
    %94 = vmatpush1.msra.mxu0 0.0
    %95 = vmatprep.subr.mxu0 0.0
    %96 = vmatpush1.msra.mxu0 0.0
    %97 = vmatprep.subr.mxu0 0.0
    %98 = vmatpush1.msra.mxu0 0.0
    %99 = vmatprep.subr.mxu0 0.0
    %100 = vmatpush1.msra.mxu0 0.0
    %101 = vmatprep.subr.mxu0 0.0
    %102 = vmatpush1.msra.mxu0 %v81
    %103 = vmatprep.subr.mxu0 0.0
    %104 = vmatpush1.msra.mxu0 %v64
    %105 = vmatprep.subr.mxu0 0.0
    %106 = vmatpush1.msra.mxu0 %v63
    %107 = vmatprep.subr.mxu0 0.0
    %108 = vmatpush1.msra.mxu0 %v62
    %109 = vmatprep.subr.mxu0 0.0
    %110 = vmatpush1.msra.mxu0 %v61
    %111 = vmatprep.subr.mxu0 0.0
    %112 = vmatpush1.msra.mxu0 %v60
    %113 = vmatprep.subr.mxu0 0.0
    %114 = vmatpush1.msra.mxu0 %v59
    %115 = vmatprep.subr.mxu0 0.0
    %116 = vmatpush2.msra.mxu0 0.0
    %117 = vmatprep.subr.mxu0 0.0
    %118 = vmatpush2.msra.mxu0 0.0
    %119 = vmatprep.subr.mxu0 0.0
    %120 = vmatpush2.msra.mxu0 0.0
    %121 = vmatprep.subr.mxu0 0.0
    %122 = vmatpush2.msra.mxu0 0.0
    %123 = vmatprep.subr.mxu0 0.0
    %124 = vmatpush2.msra.mxu0 0.0
    %125 = vmatprep.subr.mxu0 0.0
    %126 = vmatpush2.msra.mxu0 0.0
    %127 = vmatprep.subr.mxu0 0.0
    %128 = vmatpush2.msra.mxu0 0.0
    %129 = vmatprep.subr.mxu0 0.0
    %130 = vmatpush2.msra.mxu0 0.0
    %131 = vmatprep.subr.mxu0 0.0
    %132 = vmatpush2.msra.mxu0 0.0
    %133 = vmatprep.subr.mxu0 0.0
    %134 = vmatpush2.msra.mxu0 0.0
    %135 = vmatprep.subr.mxu0 0.0
    %136 = vmatpush2.msra.mxu0 0.0
    %137 = vmatprep.subr.mxu0 0.0
    %138 = vmatpush2.msra.mxu0 0.0
    %139 = vmatprep.subr.mxu0 0.0
    %140 = vmatpush2.msra.mxu0 0.0
    %141 = vmatprep.subr.mxu0 0.0
    %142 = vmatpush2.msra.mxu0 0.0
    %143 = vmatprep.subr.mxu0 0.0
    %144 = vmatpush2.msra.mxu0 0.0
    %145 = vmatprep.subr.mxu0 0.0
    %146 = vmatpush2.msra.mxu0 0.0
    %147 = vmatprep.mubr.f32.mxu0 0.0
    %148 = vmatmul.mubr.f32.gmra.mxu0 %v68
    %v149 = vpop.f32.mrf.mxu0
    %v150 = vadd.f32 0.0, %v149
    %v151 = vpop.f32.mrf.mxu0
    %152 = vmatprep.mubr.f32.mxu0 0.0
    %153 = vmatmul.mubr.f32.gmra.mxu0 %v71
    %v154 = vpop.f32.mrf.mxu0
    %v155 = vadd.f32 0.0, %v154
    %v156 = vpop.f32.mrf.mxu0
    %157 = vmatprep.mubr.f32.mxu0 0.0
    %158 = vmatmul.mubr.f32.gmra.mxu0 %v74
    %v159 = vpop.f32.mrf.mxu0
    %v160 = vadd.f32 0.0, %v159
    %v161 = vpop.f32.mrf.mxu0
    %162 = vmatprep.mubr.f32.mxu0 0.0
    %163 = vmatmul.mubr.f32.gmra.mxu0 %v77
    %v164 = vpop.f32.mrf.mxu0
    %v165 = vadd.f32 0.0, %v164
    %v166 = vpop.f32.mrf.mxu0
    %167 = vdwg.mxu0
    %v168 = vld [vmem:[#allocation2] sm:$0xff]
    %v169 = vld [vmem:[#allocation2 + $0x8] sm:$0xff]
    %v170 = vld [vmem:[#allocation2 + $0x10] sm:$0xff]
    %v171 = vld [vmem:[#allocation2 + $0x18] sm:$0xff]
    %v172 = vld [vmem:[#allocation2 + $0x20] sm:$0xff]
    %v173 = vld [vmem:[#allocation2 + $0x28] sm:$0xff]
    %v174 = vld [vmem:[#allocation2 + $0x30] sm:$0xff]
    %v175 = vld [vmem:[#allocation2 + $0x38] sm:$0xff]
    %v176 = vld [vmem:[#allocation2 + $0xc0] sm:$0x1]
    %vm177 = vcmask 261120
    %v179 = vsel %vm177, %v160, 0
    %v182 = vsel %vm177, %v165, 0
    %184 = vmatprep.subr.mxu0 0.0
    %185 = vmatpush1.msra.mxu0 0.0
    %186 = vmatprep.subr.mxu0 0.0
    %187 = vmatpush1.msra.mxu0 0.0
    %188 = vmatprep.subr.mxu0 0.0
    %189 = vmatpush1.msra.mxu0 0.0
    %190 = vmatprep.subr.mxu0 0.0
    %191 = vmatpush1.msra.mxu0 0.0
    %192 = vmatprep.subr.mxu0 0.0
    %193 = vmatpush1.msra.mxu0 0.0
    %194 = vmatprep.subr.mxu0 0.0
    %195 = vmatpush1.msra.mxu0 0.0
    %196 = vmatprep.subr.mxu0 0.0
    %197 = vmatpush1.msra.mxu0 0.0
    %198 = vmatprep.subr.mxu0 0.0
    %199 = vmatpush1.msra.mxu0 0.0
    %200 = vmatprep.subr.mxu0 0.0
    %201 = vmatpush1.msra.mxu0 0.0
    %202 = vmatprep.subr.mxu0 0.0
    %203 = vmatpush1.msra.mxu0 0.0
    %204 = vmatprep.subr.mxu0 0.0
    %205 = vmatpush1.msra.mxu0 0.0
    %206 = vmatprep.subr.mxu0 0.0
    %207 = vmatpush1.msra.mxu0 0.0
    %208 = vmatprep.subr.mxu0 0.0
    %209 = vmatpush1.msra.mxu0 %v175
    %210 = vmatprep.subr.mxu0 0.0
    %211 = vmatpush1.msra.mxu0 %v174
    %212 = vmatprep.subr.mxu0 0.0
    %213 = vmatpush1.msra.mxu0 %v173
    %214 = vmatprep.subr.mxu0 0.0
    %215 = vmatpush1.msra.mxu0 %v172
    %216 = vmatprep.subr.mxu0 0.0
    %217 = vmatpush2.msra.mxu0 0.0
    %218 = vmatprep.subr.mxu0 0.0
    %219 = vmatpush2.msra.mxu0 0.0
    %220 = vmatprep.subr.mxu0 0.0
    %221 = vmatpush2.msra.mxu0 0.0
    %222 = vmatprep.subr.mxu0 0.0
    %223 = vmatpush2.msra.mxu0 0.0
    %224 = vmatprep.subr.mxu0 0.0
    %225 = vmatpush2.msra.mxu0 0.0
    %226 = vmatprep.subr.mxu0 0.0
    %227 = vmatpush2.msra.mxu0 0.0
    %228 = vmatprep.subr.mxu0 0.0
    %229 = vmatpush2.msra.mxu0 0.0
    %230 = vmatprep.subr.mxu0 0.0
    %231 = vmatpush2.msra.mxu0 0.0
    %232 = vmatprep.subr.mxu0 0.0
    %233 = vmatpush2.msra.mxu0 0.0
    %234 = vmatprep.subr.mxu0 0.0
    %235 = vmatpush2.msra.mxu0 0.0
    %236 = vmatprep.subr.mxu0 0.0
    %237 = vmatpush2.msra.mxu0 0.0
    %238 = vmatprep.subr.mxu0 0.0
    %239 = vmatpush2.msra.mxu0 0.0
    %240 = vmatprep.subr.mxu0 0.0
    %241 = vmatpush2.msra.mxu0 0.0
    %242 = vmatprep.subr.mxu0 0.0
    %243 = vmatpush2.msra.mxu0 0.0
    %244 = vmatprep.subr.mxu0 0.0
    %245 = vmatpush2.msra.mxu0 0.0
    %246 = vmatprep.subr.mxu0 0.0
    %247 = vmatpush2.msra.mxu0 0.0
    %248 = vmatprep.mubr.f32.mxu0 0.0
    %249 = vmatmul.mubr.f32.gmra.mxu0 %v179
    %v250 = vpop.f32.mrf.mxu0
    %v251 = vadd.f32 0.0, %v250
    %v252 = vpop.f32.mrf.mxu0
    %253 = vmatprep.mubr.f32.mxu0 0.0
    %254 = vmatmul.mubr.f32.gmra.mxu0 %v182
    %v255 = vpop.f32.mrf.mxu0
    %v256 = vadd.f32 0.0, %v255
    %v257 = vpop.f32.mrf.mxu0
    %258 = vdwg.mxu0
    %v260 = vsel %vm177, %v150, 0
    %v263 = vsel %vm177, %v155, 0
    %265 = vmatprep.subr.mxu0 0.0
    %266 = vmatpush1.msra.mxu0 0.0
    %267 = vmatprep.subr.mxu0 0.0
    %268 = vmatpush1.msra.mxu0 0.0
    %269 = vmatprep.subr.mxu0 0.0
    %270 = vmatpush1.msra.mxu0 0.0
    %271 = vmatprep.subr.mxu0 0.0
    %272 = vmatpush1.msra.mxu0 0.0
    %273 = vmatprep.subr.mxu0 0.0
    %274 = vmatpush1.msra.mxu0 0.0
    %275 = vmatprep.subr.mxu0 0.0
    %276 = vmatpush1.msra.mxu0 0.0
    %277 = vmatprep.subr.mxu0 0.0
    %278 = vmatpush1.msra.mxu0 0.0
    %279 = vmatprep.subr.mxu0 0.0
    %280 = vmatpush1.msra.mxu0 0.0
    %281 = vmatprep.subr.mxu0 0.0
    %282 = vmatpush1.msra.mxu0 0.0
    %283 = vmatprep.subr.mxu0 0.0
    %284 = vmatpush1.msra.mxu0 0.0
    %285 = vmatprep.subr.mxu0 0.0
    %286 = vmatpush1.msra.mxu0 0.0
    %287 = vmatprep.subr.mxu0 0.0
    %288 = vmatpush1.msra.mxu0 0.0
    %289 = vmatprep.subr.mxu0 0.0
    %290 = vmatpush1.msra.mxu0 %v171
    %291 = vmatprep.subr.mxu0 0.0
    %292 = vmatpush1.msra.mxu0 %v170
    %293 = vmatprep.subr.mxu0 0.0
    %294 = vmatpush1.msra.mxu0 %v169
    %295 = vmatprep.subr.mxu0 0.0
    %296 = vmatpush1.msra.mxu0 %v168
    %297 = vmatprep.subr.mxu0 0.0
    %298 = vmatpush2.msra.mxu0 0.0
    %299 = vmatprep.subr.mxu0 0.0
    %300 = vmatpush2.msra.mxu0 0.0
    %301 = vmatprep.subr.mxu0 0.0
    %302 = vmatpush2.msra.mxu0 0.0
    %303 = vmatprep.subr.mxu0 0.0
    %304 = vmatpush2.msra.mxu0 0.0
    %305 = vmatprep.subr.mxu0 0.0
    %306 = vmatpush2.msra.mxu0 0.0
    %307 = vmatprep.subr.mxu0 0.0
    %308 = vmatpush2.msra.mxu0 0.0
    %309 = vmatprep.subr.mxu0 0.0
    %310 = vmatpush2.msra.mxu0 0.0
    %311 = vmatprep.subr.mxu0 0.0
    %312 = vmatpush2.msra.mxu0 0.0
    %313 = vmatprep.subr.mxu0 0.0
    %314 = vmatpush2.msra.mxu0 0.0
    %315 = vmatprep.subr.mxu0 0.0
    %316 = vmatpush2.msra.mxu0 0.0
    %317 = vmatprep.subr.mxu0 0.0
    %318 = vmatpush2.msra.mxu0 0.0
    %319 = vmatprep.subr.mxu0 0.0
    %320 = vmatpush2.msra.mxu0 0.0
    %321 = vmatprep.subr.mxu0 0.0
    %322 = vmatpush2.msra.mxu0 0.0
    %323 = vmatprep.subr.mxu0 0.0
    %324 = vmatpush2.msra.mxu0 0.0
    %325 = vmatprep.subr.mxu0 0.0
    %326 = vmatpush2.msra.mxu0 0.0
    %327 = vmatprep.subr.mxu0 0.0
    %328 = vmatpush2.msra.mxu0 0.0
    %329 = vmatprep.mubr.f32.mxu0 0.0
    %330 = vmatmul.mubr.f32.gmra.mxu0 %v260
    %v331 = vpop.f32.mrf.mxu0
    %v332 = vadd.f32 %v251, %v331
    %v333 = vpop.f32.mrf.mxu0
    %334 = vmatprep.mubr.f32.mxu0 0.0
    %335 = vmatmul.mubr.f32.gmra.mxu0 %v263
    %v336 = vpop.f32.mrf.mxu0
    %v337 = vadd.f32 %v256, %v336
    %v338 = vpop.f32.mrf.mxu0
    %339 = vdwg.mxu0
    %v340 = vlaneseq
    %v341 = vshrl.u32 %v340, 7
    %v342 = vsub.s32 0, %v341
    %v343 = vrot.slane %v176, %v342
    %v344 = vadd.f32 %v332, %v343
    %v345 = vadd.f32 %v337, %v343
    %v346 = vld [vmem:[#allocation2 + $0x40] sm:$0xff]
    %v347 = vld [vmem:[#allocation2 + $0x48] sm:$0xff]
    %v348 = vld [vmem:[#allocation2 + $0x50] sm:$0xff]
    %v349 = vld [vmem:[#allocation2 + $0x58] sm:$0xff]
    %v350 = vld [vmem:[#allocation2 + $0x60] sm:$0xff]
    %v351 = vld [vmem:[#allocation2 + $0x68] sm:$0xff]
    %v352 = vld [vmem:[#allocation2 + $0x70] sm:$0xff]
    %v353 = vld [vmem:[#allocation2 + $0x78] sm:$0xff]
    %v354 = vld [vmem:[#allocation2 + $0x80] sm:$0xff]
    %v355 = vld [vmem:[#allocation2 + $0x88] sm:$0xff]
    %v356 = vld [vmem:[#allocation2 + $0x90] sm:$0xff]
    %v357 = vld [vmem:[#allocation2 + $0x98] sm:$0xff]
    %v358 = vld [vmem:[#allocation2 + $0xa0] sm:$0xff]
    %v359 = vld [vmem:[#allocation2 + $0xa8] sm:$0xff]
    %v360 = vld [vmem:[#allocation2 + $0xb0] sm:$0xff]
    %v361 = vld [vmem:[#allocation2 + $0xb8] sm:$0xff]
    %362 = vmatprep.subr.mxu0 0.0
    %363 = vmatpush1.msra.mxu0 %v361
    %364 = vmatprep.subr.mxu0 0.0
    %365 = vmatpush1.msra.mxu0 %v360
    %366 = vmatprep.subr.mxu0 0.0
    %367 = vmatpush1.msra.mxu0 %v359
    %368 = vmatprep.subr.mxu0 0.0
    %369 = vmatpush1.msra.mxu0 %v358
    %370 = vmatprep.subr.mxu0 0.0
    %371 = vmatpush1.msra.mxu0 %v357
    %372 = vmatprep.subr.mxu0 0.0
    %373 = vmatpush1.msra.mxu0 %v356
    %374 = vmatprep.subr.mxu0 0.0
    %375 = vmatpush1.msra.mxu0 %v355
    %376 = vmatprep.subr.mxu0 0.0
    %377 = vmatpush1.msra.mxu0 %v354
    %378 = vmatprep.subr.mxu0 0.0
    %379 = vmatpush1.msra.mxu0 %v353
    %380 = vmatprep.subr.mxu0 0.0
    %381 = vmatpush1.msra.mxu0 %v352
    %382 = vmatprep.subr.mxu0 0.0
    %383 = vmatpush1.msra.mxu0 %v351
    %384 = vmatprep.subr.mxu0 0.0
    %385 = vmatpush1.msra.mxu0 %v350
    %386 = vmatprep.subr.mxu0 0.0
    %387 = vmatpush1.msra.mxu0 %v349
    %388 = vmatprep.subr.mxu0 0.0
    %389 = vmatpush1.msra.mxu0 %v348
    %390 = vmatprep.subr.mxu0 0.0
    %391 = vmatpush1.msra.mxu0 %v347
    %392 = vmatprep.subr.mxu0 0.0
    %393 = vmatpush1.msra.mxu0 %v346
    %394 = vmatprep.subr.mxu0 0.0
    %395 = vmatpush2.msra.mxu0 0.0
    %396 = vmatprep.subr.mxu0 0.0
    %397 = vmatpush2.msra.mxu0 0.0
    %398 = vmatprep.subr.mxu0 0.0
    %399 = vmatpush2.msra.mxu0 0.0
    %400 = vmatprep.subr.mxu0 0.0
    %401 = vmatpush2.msra.mxu0 0.0
    %402 = vmatprep.subr.mxu0 0.0
    %403 = vmatpush2.msra.mxu0 0.0
    %404 = vmatprep.subr.mxu0 0.0
    %405 = vmatpush2.msra.mxu0 0.0
    %406 = vmatprep.subr.mxu0 0.0
    %407 = vmatpush2.msra.mxu0 0.0
    %408 = vmatprep.subr.mxu0 0.0
    %409 = vmatpush2.msra.mxu0 0.0
    %410 = vmatprep.subr.mxu0 0.0
    %411 = vmatpush2.msra.mxu0 0.0
    %412 = vmatprep.subr.mxu0 0.0
    %413 = vmatpush2.msra.mxu0 0.0
    %414 = vmatprep.subr.mxu0 0.0
    %415 = vmatpush2.msra.mxu0 0.0
    %416 = vmatprep.subr.mxu0 0.0
    %417 = vmatpush2.msra.mxu0 0.0
    %418 = vmatprep.subr.mxu0 0.0
    %419 = vmatpush2.msra.mxu0 0.0
    %420 = vmatprep.subr.mxu0 0.0
    %421 = vmatpush2.msra.mxu0 0.0
    %422 = vmatprep.subr.mxu0 0.0
    %423 = vmatpush2.msra.mxu0 0.0
    %424 = vmatprep.subr.mxu0 0.0
    %425 = vmatpush2.msra.mxu0 0.0
    %426 = vmatprep.mubr.f32.mxu0 0.0
    %427 = vmatmul.mubr.f32.gmra.mxu0 0.0
    %v428 = vpop.f32.mrf.mxu0
    %v429 = vadd.f32 0.0, %v428
    %v430 = vpop.f32.mrf.mxu0
    %431 = vdwg.mxu0
    %v432 = vadd.f32 %v344, %v429
    %v433 = vtanh.pop %v432
    %434 = vmatprep.subr.mxu0 0.0
    %435 = vmatpush1.msra.mxu0 %v361
    %436 = vmatprep.subr.mxu0 0.0
    %437 = vmatpush1.msra.mxu0 %v360
    %438 = vmatprep.subr.mxu0 0.0
    %439 = vmatpush1.msra.mxu0 %v359
    %440 = vmatprep.subr.mxu0 0.0
    %441 = vmatpush1.msra.mxu0 %v358
    %442 = vmatprep.subr.mxu0 0.0
    %443 = vmatpush1.msra.mxu0 %v357
    %444 = vmatprep.subr.mxu0 0.0
    %445 = vmatpush1.msra.mxu0 %v356
    %446 = vmatprep.subr.mxu0 0.0
    %447 = vmatpush1.msra.mxu0 %v355
    %448 = vmatprep.subr.mxu0 0.0
    %449 = vmatpush1.msra.mxu0 %v354
    %450 = vmatprep.subr.mxu0 0.0
    %451 = vmatpush1.msra.mxu0 %v353
    %452 = vmatprep.subr.mxu0 0.0
    %453 = vmatpush1.msra.mxu0 %v352
    %454 = vmatprep.subr.mxu0 0.0
    %455 = vmatpush1.msra.mxu0 %v351
    %456 = vmatprep.subr.mxu0 0.0
    %457 = vmatpush1.msra.mxu0 %v350
    %458 = vmatprep.subr.mxu0 0.0
    %459 = vmatpush1.msra.mxu0 %v349
    %460 = vmatprep.subr.mxu0 0.0
    %461 = vmatpush1.msra.mxu0 %v348
    %462 = vmatprep.subr.mxu0 0.0
    %463 = vmatpush1.msra.mxu0 %v347
    %464 = vmatprep.subr.mxu0 0.0
    %465 = vmatpush1.msra.mxu0 %v346
    %466 = vmatprep.subr.mxu0 0.0
    %467 = vmatpush2.msra.mxu0 0.0
    %468 = vmatprep.subr.mxu0 0.0
    %469 = vmatpush2.msra.mxu0 0.0
    %470 = vmatprep.subr.mxu0 0.0
    %471 = vmatpush2.msra.mxu0 0.0
    %472 = vmatprep.subr.mxu0 0.0
    %473 = vmatpush2.msra.mxu0 0.0
    %474 = vmatprep.subr.mxu0 0.0
    %475 = vmatpush2.msra.mxu0 0.0
    %476 = vmatprep.subr.mxu0 0.0
    %477 = vmatpush2.msra.mxu0 0.0
    %478 = vmatprep.subr.mxu0 0.0
    %479 = vmatpush2.msra.mxu0 0.0
    %480 = vmatprep.subr.mxu0 0.0
    %481 = vmatpush2.msra.mxu0 0.0
    %482 = vmatprep.subr.mxu0 0.0
    %483 = vmatpush2.msra.mxu0 0.0
    %484 = vmatprep.subr.mxu0 0.0
    %485 = vmatpush2.msra.mxu0 0.0
    %486 = vmatprep.subr.mxu0 0.0
    %487 = vmatpush2.msra.mxu0 0.0
    %488 = vmatprep.subr.mxu0 0.0
    %489 = vmatpush2.msra.mxu0 0.0
    %490 = vmatprep.subr.mxu0 0.0
    %491 = vmatpush2.msra.mxu0 0.0
    %492 = vmatprep.subr.mxu0 0.0
    %493 = vmatpush2.msra.mxu0 0.0
    %494 = vmatprep.subr.mxu0 0.0
    %495 = vmatpush2.msra.mxu0 0.0
    %496 = vmatprep.subr.mxu0 0.0
    %497 = vmatpush2.msra.mxu0 0.0
    %498 = vmatprep.mubr.f32.mxu0 0.0
    %499 = vmatmul.mubr.f32.gmra.mxu0 %v433
    %v500 = vpop.f32.mrf.mxu0
    %v501 = vadd.f32 0.0, %v500
    %v502 = vpop.f32.mrf.mxu0
    %503 = vdwg.mxu0
    %v505 = vrot.slane %v501, 6
    %v507 = vadd.f32 %v344, %v505
    %v508 = vtanh.pop %v507
    %v510 = vrot.slane %v508, 2
    %512 = vmatprep.subr.mxu0 0.0
    %513 = vmatpush1.msra.mxu0 %v361
    %514 = vmatprep.subr.mxu0 0.0
    %515 = vmatpush1.msra.mxu0 %v360
    %516 = vmatprep.subr.mxu0 0.0
    %517 = vmatpush1.msra.mxu0 %v359
    %518 = vmatprep.subr.mxu0 0.0
    %519 = vmatpush1.msra.mxu0 %v358
    %520 = vmatprep.subr.mxu0 0.0
    %521 = vmatpush1.msra.mxu0 %v357
    %522 = vmatprep.subr.mxu0 0.0
    %523 = vmatpush1.msra.mxu0 %v356
    %524 = vmatprep.subr.mxu0 0.0
    %525 = vmatpush1.msra.mxu0 %v355
    %526 = vmatprep.subr.mxu0 0.0
    %527 = vmatpush1.msra.mxu0 %v354
    %528 = vmatprep.subr.mxu0 0.0
    %529 = vmatpush1.msra.mxu0 %v353
    %530 = vmatprep.subr.mxu0 0.0
    %531 = vmatpush1.msra.mxu0 %v352
    %532 = vmatprep.subr.mxu0 0.0
    %533 = vmatpush1.msra.mxu0 %v351
    %534 = vmatprep.subr.mxu0 0.0
    %535 = vmatpush1.msra.mxu0 %v350
    %536 = vmatprep.subr.mxu0 0.0
    %537 = vmatpush1.msra.mxu0 %v349
    %538 = vmatprep.subr.mxu0 0.0
    %539 = vmatpush1.msra.mxu0 %v348
    %540 = vmatprep.subr.mxu0 0.0
    %541 = vmatpush1.msra.mxu0 %v347
    %542 = vmatprep.subr.mxu0 0.0
    %543 = vmatpush1.msra.mxu0 %v346
    %544 = vmatprep.subr.mxu0 0.0
    %545 = vmatpush2.msra.mxu0 0.0
    %546 = vmatprep.subr.mxu0 0.0
    %547 = vmatpush2.msra.mxu0 0.0
    %548 = vmatprep.subr.mxu0 0.0
    %549 = vmatpush2.msra.mxu0 0.0
    %550 = vmatprep.subr.mxu0 0.0
    %551 = vmatpush2.msra.mxu0 0.0
    %552 = vmatprep.subr.mxu0 0.0
    %553 = vmatpush2.msra.mxu0 0.0
    %554 = vmatprep.subr.mxu0 0.0
    %555 = vmatpush2.msra.mxu0 0.0
    %556 = vmatprep.subr.mxu0 0.0
    %557 = vmatpush2.msra.mxu0 0.0
    %558 = vmatprep.subr.mxu0 0.0
    %559 = vmatpush2.msra.mxu0 0.0
    %560 = vmatprep.subr.mxu0 0.0
    %561 = vmatpush2.msra.mxu0 0.0
    %562 = vmatprep.subr.mxu0 0.0
    %563 = vmatpush2.msra.mxu0 0.0
    %564 = vmatprep.subr.mxu0 0.0
    %565 = vmatpush2.msra.mxu0 0.0
    %566 = vmatprep.subr.mxu0 0.0
    %567 = vmatpush2.msra.mxu0 0.0
    %568 = vmatprep.subr.mxu0 0.0
    %569 = vmatpush2.msra.mxu0 0.0
    %570 = vmatprep.subr.mxu0 0.0
    %571 = vmatpush2.msra.mxu0 0.0
    %572 = vmatprep.subr.mxu0 0.0
    %573 = vmatpush2.msra.mxu0 0.0
    %574 = vmatprep.subr.mxu0 0.0
    %575 = vmatpush2.msra.mxu0 0.0
    %576 = vmatprep.mubr.f32.mxu0 0.0
    %577 = vmatmul.mubr.f32.gmra.mxu0 %v510
    %v578 = vpop.f32.mrf.mxu0
    %v579 = vadd.f32 0.0, %v578
    %v580 = vpop.f32.mrf.mxu0
    %581 = vdwg.mxu0
    %v583 = vrot.slane %v579, 4
    %v585 = vadd.f32 %v344, %v583
    %v586 = vtanh.pop %v585
    %v588 = vrot.slane %v586, 4
    %590 = vmatprep.subr.mxu0 0.0
    %591 = vmatpush1.msra.mxu0 %v361
    %592 = vmatprep.subr.mxu0 0.0
    %593 = vmatpush1.msra.mxu0 %v360
    %594 = vmatprep.subr.mxu0 0.0
    %595 = vmatpush1.msra.mxu0 %v359
    %596 = vmatprep.subr.mxu0 0.0
    %597 = vmatpush1.msra.mxu0 %v358
    %598 = vmatprep.subr.mxu0 0.0
    %599 = vmatpush1.msra.mxu0 %v357
    %600 = vmatprep.subr.mxu0 0.0
    %601 = vmatpush1.msra.mxu0 %v356
    %602 = vmatprep.subr.mxu0 0.0
    %603 = vmatpush1.msra.mxu0 %v355
    %604 = vmatprep.subr.mxu0 0.0
    %605 = vmatpush1.msra.mxu0 %v354
    %606 = vmatprep.subr.mxu0 0.0
    %607 = vmatpush1.msra.mxu0 %v353
    %608 = vmatprep.subr.mxu0 0.0
    %609 = vmatpush1.msra.mxu0 %v352
    %610 = vmatprep.subr.mxu0 0.0
    %611 = vmatpush1.msra.mxu0 %v351
    %612 = vmatprep.subr.mxu0 0.0
    %613 = vmatpush1.msra.mxu0 %v350
    %614 = vmatprep.subr.mxu0 0.0
    %615 = vmatpush1.msra.mxu0 %v349
    %616 = vmatprep.subr.mxu0 0.0
    %617 = vmatpush1.msra.mxu0 %v348
    %618 = vmatprep.subr.mxu0 0.0
    %619 = vmatpush1.msra.mxu0 %v347
    %620 = vmatprep.subr.mxu0 0.0
    %621 = vmatpush1.msra.mxu0 %v346
    %622 = vmatprep.subr.mxu0 0.0
    %623 = vmatpush2.msra.mxu0 0.0
    %624 = vmatprep.subr.mxu0 0.0
    %625 = vmatpush2.msra.mxu0 0.0
    %626 = vmatprep.subr.mxu0 0.0
    %627 = vmatpush2.msra.mxu0 0.0
    %628 = vmatprep.subr.mxu0 0.0
    %629 = vmatpush2.msra.mxu0 0.0
    %630 = vmatprep.subr.mxu0 0.0
    %631 = vmatpush2.msra.mxu0 0.0
    %632 = vmatprep.subr.mxu0 0.0
    %633 = vmatpush2.msra.mxu0 0.0
    %634 = vmatprep.subr.mxu0 0.0
    %635 = vmatpush2.msra.mxu0 0.0
    %636 = vmatprep.subr.mxu0 0.0
    %637 = vmatpush2.msra.mxu0 0.0
    %638 = vmatprep.subr.mxu0 0.0
    %639 = vmatpush2.msra.mxu0 0.0
    %640 = vmatprep.subr.mxu0 0.0
    %641 = vmatpush2.msra.mxu0 0.0
    %642 = vmatprep.subr.mxu0 0.0
    %643 = vmatpush2.msra.mxu0 0.0
    %644 = vmatprep.subr.mxu0 0.0
    %645 = vmatpush2.msra.mxu0 0.0
    %646 = vmatprep.subr.mxu0 0.0
    %647 = vmatpush2.msra.mxu0 0.0
    %648 = vmatprep.subr.mxu0 0.0
    %649 = vmatpush2.msra.mxu0 0.0
    %650 = vmatprep.subr.mxu0 0.0
    %651 = vmatpush2.msra.mxu0 0.0
    %652 = vmatprep.subr.mxu0 0.0
    %653 = vmatpush2.msra.mxu0 0.0
    %654 = vmatprep.mubr.f32.mxu0 0.0
    %655 = vmatmul.mubr.f32.gmra.mxu0 %v588
    %v656 = vpop.f32.mrf.mxu0
    %v657 = vadd.f32 0.0, %v656
    %v658 = vpop.f32.mrf.mxu0
    %659 = vdwg.mxu0
    %v661 = vrot.slane %v657, 2
    %v663 = vadd.f32 %v344, %v661
    %v664 = vtanh.pop %v663
    %v666 = vrot.slane %v664, 6
    %668 = vmatprep.subr.mxu0 0.0
    %669 = vmatpush1.msra.mxu0 %v361
    %670 = vmatprep.subr.mxu0 0.0
    %671 = vmatpush1.msra.mxu0 %v360
    %672 = vmatprep.subr.mxu0 0.0
    %673 = vmatpush1.msra.mxu0 %v359
    %674 = vmatprep.subr.mxu0 0.0
    %675 = vmatpush1.msra.mxu0 %v358
    %676 = vmatprep.subr.mxu0 0.0
    %677 = vmatpush1.msra.mxu0 %v357
    %678 = vmatprep.subr.mxu0 0.0
    %679 = vmatpush1.msra.mxu0 %v356
    %680 = vmatprep.subr.mxu0 0.0
    %681 = vmatpush1.msra.mxu0 %v355
    %682 = vmatprep.subr.mxu0 0.0
    %683 = vmatpush1.msra.mxu0 %v354
    %684 = vmatprep.subr.mxu0 0.0
    %685 = vmatpush1.msra.mxu0 %v353
    %686 = vmatprep.subr.mxu0 0.0
    %687 = vmatpush1.msra.mxu0 %v352
    %688 = vmatprep.subr.mxu0 0.0
    %689 = vmatpush1.msra.mxu0 %v351
    %690 = vmatprep.subr.mxu0 0.0
    %691 = vmatpush1.msra.mxu0 %v350
    %692 = vmatprep.subr.mxu0 0.0
    %693 = vmatpush1.msra.mxu0 %v349
    %694 = vmatprep.subr.mxu0 0.0
    %695 = vmatpush1.msra.mxu0 %v348
    %696 = vmatprep.subr.mxu0 0.0
    %697 = vmatpush1.msra.mxu0 %v347
    %698 = vmatprep.subr.mxu0 0.0
    %699 = vmatpush1.msra.mxu0 %v346
    %700 = vmatprep.subr.mxu0 0.0
    %701 = vmatpush2.msra.mxu0 0.0
    %702 = vmatprep.subr.mxu0 0.0
    %703 = vmatpush2.msra.mxu0 0.0
    %704 = vmatprep.subr.mxu0 0.0
    %705 = vmatpush2.msra.mxu0 0.0
    %706 = vmatprep.subr.mxu0 0.0
    %707 = vmatpush2.msra.mxu0 0.0
    %708 = vmatprep.subr.mxu0 0.0
    %709 = vmatpush2.msra.mxu0 0.0
    %710 = vmatprep.subr.mxu0 0.0
    %711 = vmatpush2.msra.mxu0 0.0
    %712 = vmatprep.subr.mxu0 0.0
    %713 = vmatpush2.msra.mxu0 0.0
    %714 = vmatprep.subr.mxu0 0.0
    %715 = vmatpush2.msra.mxu0 0.0
    %716 = vmatprep.subr.mxu0 0.0
    %717 = vmatpush2.msra.mxu0 0.0
    %718 = vmatprep.subr.mxu0 0.0
    %719 = vmatpush2.msra.mxu0 0.0
    %720 = vmatprep.subr.mxu0 0.0
    %721 = vmatpush2.msra.mxu0 0.0
    %722 = vmatprep.subr.mxu0 0.0
    %723 = vmatpush2.msra.mxu0 0.0
    %724 = vmatprep.subr.mxu0 0.0
    %725 = vmatpush2.msra.mxu0 0.0
    %726 = vmatprep.subr.mxu0 0.0
    %727 = vmatpush2.msra.mxu0 0.0
    %728 = vmatprep.subr.mxu0 0.0
    %729 = vmatpush2.msra.mxu0 0.0
    %730 = vmatprep.subr.mxu0 0.0
    %731 = vmatpush2.msra.mxu0 0.0
    %732 = vmatprep.mubr.f32.mxu0 0.0
    %733 = vmatmul.mubr.f32.gmra.mxu0 %v666
    %v734 = vpop.f32.mrf.mxu0
    %v735 = vadd.f32 0.0, %v734
    %v736 = vpop.f32.mrf.mxu0
    %737 = vdwg.mxu0
    %v738 = vadd.f32 %v345, %v735
    %v739 = vtanh.pop %v738
    %740 = vmatprep.subr.mxu0 0.0
    %741 = vmatpush1.msra.mxu0 %v361
    %742 = vmatprep.subr.mxu0 0.0
    %743 = vmatpush1.msra.mxu0 %v360
    %744 = vmatprep.subr.mxu0 0.0
    %745 = vmatpush1.msra.mxu0 %v359
    %746 = vmatprep.subr.mxu0 0.0
    %747 = vmatpush1.msra.mxu0 %v358
    %748 = vmatprep.subr.mxu0 0.0
    %749 = vmatpush1.msra.mxu0 %v357
    %750 = vmatprep.subr.mxu0 0.0
    %751 = vmatpush1.msra.mxu0 %v356
    %752 = vmatprep.subr.mxu0 0.0
    %753 = vmatpush1.msra.mxu0 %v355
    %754 = vmatprep.subr.mxu0 0.0
    %755 = vmatpush1.msra.mxu0 %v354
    %756 = vmatprep.subr.mxu0 0.0
    %757 = vmatpush1.msra.mxu0 %v353
    %758 = vmatprep.subr.mxu0 0.0
    %759 = vmatpush1.msra.mxu0 %v352
    %760 = vmatprep.subr.mxu0 0.0
    %761 = vmatpush1.msra.mxu0 %v351
    %762 = vmatprep.subr.mxu0 0.0
    %763 = vmatpush1.msra.mxu0 %v350
    %764 = vmatprep.subr.mxu0 0.0
    %765 = vmatpush1.msra.mxu0 %v349
    %766 = vmatprep.subr.mxu0 0.0
    %767 = vmatpush1.msra.mxu0 %v348
    %768 = vmatprep.subr.mxu0 0.0
    %769 = vmatpush1.msra.mxu0 %v347
    %770 = vmatprep.subr.mxu0 0.0
    %771 = vmatpush1.msra.mxu0 %v346
    %772 = vmatprep.subr.mxu0 0.0
    %773 = vmatpush2.msra.mxu0 0.0
    %774 = vmatprep.subr.mxu0 0.0
    %775 = vmatpush2.msra.mxu0 0.0
    %776 = vmatprep.subr.mxu0 0.0
    %777 = vmatpush2.msra.mxu0 0.0
    %778 = vmatprep.subr.mxu0 0.0
    %779 = vmatpush2.msra.mxu0 0.0
    %780 = vmatprep.subr.mxu0 0.0
    %781 = vmatpush2.msra.mxu0 0.0
    %782 = vmatprep.subr.mxu0 0.0
    %783 = vmatpush2.msra.mxu0 0.0
    %784 = vmatprep.subr.mxu0 0.0
    %785 = vmatpush2.msra.mxu0 0.0
    %786 = vmatprep.subr.mxu0 0.0
    %787 = vmatpush2.msra.mxu0 0.0
    %788 = vmatprep.subr.mxu0 0.0
    %789 = vmatpush2.msra.mxu0 0.0
    %790 = vmatprep.subr.mxu0 0.0
    %791 = vmatpush2.msra.mxu0 0.0
    %792 = vmatprep.subr.mxu0 0.0
    %793 = vmatpush2.msra.mxu0 0.0
    %794 = vmatprep.subr.mxu0 0.0
    %795 = vmatpush2.msra.mxu0 0.0
    %796 = vmatprep.subr.mxu0 0.0
    %797 = vmatpush2.msra.mxu0 0.0
    %798 = vmatprep.subr.mxu0 0.0
    %799 = vmatpush2.msra.mxu0 0.0
    %800 = vmatprep.subr.mxu0 0.0
    %801 = vmatpush2.msra.mxu0 0.0
    %802 = vmatprep.subr.mxu0 0.0
    %803 = vmatpush2.msra.mxu0 0.0
    %804 = vmatprep.mubr.f32.mxu0 0.0
    %805 = vmatmul.mubr.f32.gmra.mxu0 %v739
    %v806 = vpop.f32.mrf.mxu0
    %v807 = vadd.f32 0.0, %v806
    %v808 = vpop.f32.mrf.mxu0
    %809 = vdwg.mxu0
    %v811 = vrot.slane %v807, 6
    %v813 = vadd.f32 %v345, %v811
    %v814 = vtanh.pop %v813
    %v816 = vrot.slane %v814, 2
    %818 = vmatprep.subr.mxu0 0.0
    %819 = vmatpush1.msra.mxu0 %v361
    %820 = vmatprep.subr.mxu0 0.0
    %821 = vmatpush1.msra.mxu0 %v360
    %822 = vmatprep.subr.mxu0 0.0
    %823 = vmatpush1.msra.mxu0 %v359
    %824 = vmatprep.subr.mxu0 0.0
    %825 = vmatpush1.msra.mxu0 %v358
    %826 = vmatprep.subr.mxu0 0.0
    %827 = vmatpush1.msra.mxu0 %v357
    %828 = vmatprep.subr.mxu0 0.0
    %829 = vmatpush1.msra.mxu0 %v356
    %830 = vmatprep.subr.mxu0 0.0
    %831 = vmatpush1.msra.mxu0 %v355
    %832 = vmatprep.subr.mxu0 0.0
    %833 = vmatpush1.msra.mxu0 %v354
    %834 = vmatprep.subr.mxu0 0.0
    %835 = vmatpush1.msra.mxu0 %v353
    %836 = vmatprep.subr.mxu0 0.0
    %837 = vmatpush1.msra.mxu0 %v352
    %838 = vmatprep.subr.mxu0 0.0
    %839 = vmatpush1.msra.mxu0 %v351
    %840 = vmatprep.subr.mxu0 0.0
    %841 = vmatpush1.msra.mxu0 %v350
    %842 = vmatprep.subr.mxu0 0.0
    %843 = vmatpush1.msra.mxu0 %v349
    %844 = vmatprep.subr.mxu0 0.0
    %845 = vmatpush1.msra.mxu0 %v348
    %846 = vmatprep.subr.mxu0 0.0
    %847 = vmatpush1.msra.mxu0 %v347
    %848 = vmatprep.subr.mxu0 0.0
    %849 = vmatpush1.msra.mxu0 %v346
    %850 = vmatprep.subr.mxu0 0.0
    %851 = vmatpush2.msra.mxu0 0.0
    %852 = vmatprep.subr.mxu0 0.0
    %853 = vmatpush2.msra.mxu0 0.0
    %854 = vmatprep.subr.mxu0 0.0
    %855 = vmatpush2.msra.mxu0 0.0
    %856 = vmatprep.subr.mxu0 0.0
    %857 = vmatpush2.msra.mxu0 0.0
    %858 = vmatprep.subr.mxu0 0.0
    %859 = vmatpush2.msra.mxu0 0.0
    %860 = vmatprep.subr.mxu0 0.0
    %861 = vmatpush2.msra.mxu0 0.0
    %862 = vmatprep.subr.mxu0 0.0
    %863 = vmatpush2.msra.mxu0 0.0
    %864 = vmatprep.subr.mxu0 0.0
    %865 = vmatpush2.msra.mxu0 0.0
    %866 = vmatprep.subr.mxu0 0.0
    %867 = vmatpush2.msra.mxu0 0.0
    %868 = vmatprep.subr.mxu0 0.0
    %869 = vmatpush2.msra.mxu0 0.0
    %870 = vmatprep.subr.mxu0 0.0
    %871 = vmatpush2.msra.mxu0 0.0
    %872 = vmatprep.subr.mxu0 0.0
    %873 = vmatpush2.msra.mxu0 0.0
    %874 = vmatprep.subr.mxu0 0.0
    %875 = vmatpush2.msra.mxu0 0.0
    %876 = vmatprep.subr.mxu0 0.0
    %877 = vmatpush2.msra.mxu0 0.0
    %878 = vmatprep.subr.mxu0 0.0
    %879 = vmatpush2.msra.mxu0 0.0
    %880 = vmatprep.subr.mxu0 0.0
    %881 = vmatpush2.msra.mxu0 0.0
    %882 = vmatprep.mubr.f32.mxu0 0.0
    %883 = vmatmul.mubr.f32.gmra.mxu0 %v816
    %v884 = vpop.f32.mrf.mxu0
    %v885 = vadd.f32 0.0, %v884
    %v886 = vpop.f32.mrf.mxu0
    %887 = vdwg.mxu0
    %v889 = vrot.slane %v885, 4
    %v891 = vadd.f32 %v345, %v889
    %v892 = vtanh.pop %v891
    %v894 = vrot.slane %v892, 4
    %896 = vmatprep.subr.mxu0 0.0
    %897 = vmatpush1.msra.mxu0 %v361
    %898 = vmatprep.subr.mxu0 0.0
    %899 = vmatpush1.msra.mxu0 %v360
    %900 = vmatprep.subr.mxu0 0.0
    %901 = vmatpush1.msra.mxu0 %v359
    %902 = vmatprep.subr.mxu0 0.0
    %903 = vmatpush1.msra.mxu0 %v358
    %904 = vmatprep.subr.mxu0 0.0
    %905 = vmatpush1.msra.mxu0 %v357
    %906 = vmatprep.subr.mxu0 0.0
    %907 = vmatpush1.msra.mxu0 %v356
    %908 = vmatprep.subr.mxu0 0.0
    %909 = vmatpush1.msra.mxu0 %v355
    %910 = vmatprep.subr.mxu0 0.0
    %911 = vmatpush1.msra.mxu0 %v354
    %912 = vmatprep.subr.mxu0 0.0
    %913 = vmatpush1.msra.mxu0 %v353
    %914 = vmatprep.subr.mxu0 0.0
    %915 = vmatpush1.msra.mxu0 %v352
    %916 = vmatprep.subr.mxu0 0.0
    %917 = vmatpush1.msra.mxu0 %v351
    %918 = vmatprep.subr.mxu0 0.0
    %919 = vmatpush1.msra.mxu0 %v350
    %920 = vmatprep.subr.mxu0 0.0
    %921 = vmatpush1.msra.mxu0 %v349
    %922 = vmatprep.subr.mxu0 0.0
    %923 = vmatpush1.msra.mxu0 %v348
    %924 = vmatprep.subr.mxu0 0.0
    %925 = vmatpush1.msra.mxu0 %v347
    %926 = vmatprep.subr.mxu0 0.0
    %927 = vmatpush1.msra.mxu0 %v346
    %928 = vmatprep.subr.mxu0 0.0
    %929 = vmatpush2.msra.mxu0 0.0
    %930 = vmatprep.subr.mxu0 0.0
    %931 = vmatpush2.msra.mxu0 0.0
    %932 = vmatprep.subr.mxu0 0.0
    %933 = vmatpush2.msra.mxu0 0.0
    %934 = vmatprep.subr.mxu0 0.0
    %935 = vmatpush2.msra.mxu0 0.0
    %936 = vmatprep.subr.mxu0 0.0
    %937 = vmatpush2.msra.mxu0 0.0
    %938 = vmatprep.subr.mxu0 0.0
    %939 = vmatpush2.msra.mxu0 0.0
    %940 = vmatprep.subr.mxu0 0.0
    %941 = vmatpush2.msra.mxu0 0.0
    %942 = vmatprep.subr.mxu0 0.0
    %943 = vmatpush2.msra.mxu0 0.0
    %944 = vmatprep.subr.mxu0 0.0
    %945 = vmatpush2.msra.mxu0 0.0
    %946 = vmatprep.subr.mxu0 0.0
    %947 = vmatpush2.msra.mxu0 0.0
    %948 = vmatprep.subr.mxu0 0.0
    %949 = vmatpush2.msra.mxu0 0.0
    %950 = vmatprep.subr.mxu0 0.0
    %951 = vmatpush2.msra.mxu0 0.0
    %952 = vmatprep.subr.mxu0 0.0
    %953 = vmatpush2.msra.mxu0 0.0
    %954 = vmatprep.subr.mxu0 0.0
    %955 = vmatpush2.msra.mxu0 0.0
    %956 = vmatprep.subr.mxu0 0.0
    %957 = vmatpush2.msra.mxu0 0.0
    %958 = vmatprep.subr.mxu0 0.0
    %959 = vmatpush2.msra.mxu0 0.0
    %960 = vmatprep.mubr.f32.mxu0 0.0
    %961 = vmatmul.mubr.f32.gmra.mxu0 %v894
    %v962 = vpop.f32.mrf.mxu0
    %v963 = vadd.f32 0.0, %v962
    %v964 = vpop.f32.mrf.mxu0
    %965 = vdwg.mxu0
    %v967 = vrot.slane %v963, 2
    %v969 = vadd.f32 %v345, %v967
    %v970 = vtanh.pop %v969
    %v971 = vld [vmem:[#allocation2 + $0xc8] sm:$0xff]
    %v972 = vld [vmem:[#allocation2 + $0xd0] sm:$0xff]
    %v973 = vld [vmem:[#allocation2 + $0xd8] sm:$0xff]
    %v974 = vld [vmem:[#allocation2 + $0xe0] sm:$0xff]
    %v975 = vld [vmem:[#allocation2 + $0xe8] sm:$0xff]
    %v976 = vld [vmem:[#allocation2 + $0xf0] sm:$0xff]
    %v977 = vld [vmem:[#allocation2 + $0xf8] sm:$0xff]
    %v978 = vld [vmem:[#allocation2 + $0x100] sm:$0xff]
    %v979 = vld [vmem:[#allocation2 + $0x108] sm:$0xff]
    %v980 = vld [vmem:[#allocation2 + $0x110] sm:$0xff]
    %v981 = vld [vmem:[#allocation2 + $0x118] sm:$0xff]
    %v982 = vld [vmem:[#allocation2 + $0x120] sm:$0xff]
    %v983 = vld [vmem:[#allocation2 + $0x128] sm:$0xff]
    %v984 = vld [vmem:[#allocation2 + $0x130] sm:$0xff]
    %v985 = vld [vmem:[#allocation2 + $0x138] sm:$0xff]
    %v986 = vld [vmem:[#allocation2 + $0x140] sm:$0xff]
    %v988 = vrot.slane %v970, 6
    %990 = vmatprep.subr.mxu0 0.0
    %991 = vmatpush1.msra.mxu0 %v986
    %992 = vmatprep.subr.mxu0 0.0
    %993 = vmatpush1.msra.mxu0 %v985
    %994 = vmatprep.subr.mxu0 0.0
    %995 = vmatpush1.msra.mxu0 %v984
    %996 = vmatprep.subr.mxu0 0.0
    %997 = vmatpush1.msra.mxu0 %v983
    %998 = vmatprep.subr.mxu0 0.0
    %999 = vmatpush1.msra.mxu0 %v982
    %1000 = vmatprep.subr.mxu0 0.0
    %1001 = vmatpush1.msra.mxu0 %v981
    %1002 = vmatprep.subr.mxu0 0.0
    %1003 = vmatpush1.msra.mxu0 %v980
    %1004 = vmatprep.subr.mxu0 0.0
    %1005 = vmatpush1.msra.mxu0 %v979
    %1006 = vmatprep.subr.mxu0 0.0
    %1007 = vmatpush1.msra.mxu0 %v978
    %1008 = vmatprep.subr.mxu0 0.0
    %1009 = vmatpush1.msra.mxu0 %v977
    %1010 = vmatprep.subr.mxu0 0.0
    %1011 = vmatpush1.msra.mxu0 %v976
    %1012 = vmatprep.subr.mxu0 0.0
    %1013 = vmatpush1.msra.mxu0 %v975
    %1014 = vmatprep.subr.mxu0 0.0
    %1015 = vmatpush1.msra.mxu0 %v974
    %1016 = vmatprep.subr.mxu0 0.0
    %1017 = vmatpush1.msra.mxu0 %v973
    %1018 = vmatprep.subr.mxu0 0.0
    %1019 = vmatpush1.msra.mxu0 %v972
    %1020 = vmatprep.subr.mxu0 0.0
    %1021 = vmatpush1.msra.mxu0 %v971
    %1022 = vmatprep.subr.mxu0 0.0
    %1023 = vmatpush2.msra.mxu0 0.0
    %1024 = vmatprep.subr.mxu0 0.0
    %1025 = vmatpush2.msra.mxu0 0.0
    %1026 = vmatprep.subr.mxu0 0.0
    %1027 = vmatpush2.msra.mxu0 0.0
    %1028 = vmatprep.subr.mxu0 0.0
    %1029 = vmatpush2.msra.mxu0 0.0
    %1030 = vmatprep.subr.mxu0 0.0
    %1031 = vmatpush2.msra.mxu0 0.0
    %1032 = vmatprep.subr.mxu0 0.0
    %1033 = vmatpush2.msra.mxu0 0.0
    %1034 = vmatprep.subr.mxu0 0.0
    %1035 = vmatpush2.msra.mxu0 0.0
    %1036 = vmatprep.subr.mxu0 0.0
    %1037 = vmatpush2.msra.mxu0 0.0
    %1038 = vmatprep.subr.mxu0 0.0
    %1039 = vmatpush2.msra.mxu0 0.0
    %1040 = vmatprep.subr.mxu0 0.0
    %1041 = vmatpush2.msra.mxu0 0.0
    %1042 = vmatprep.subr.mxu0 0.0
    %1043 = vmatpush2.msra.mxu0 0.0
    %1044 = vmatprep.subr.mxu0 0.0
    %1045 = vmatpush2.msra.mxu0 0.0
    %1046 = vmatprep.subr.mxu0 0.0
    %1047 = vmatpush2.msra.mxu0 0.0
    %1048 = vmatprep.subr.mxu0 0.0
    %1049 = vmatpush2.msra.mxu0 0.0
    %1050 = vmatprep.subr.mxu0 0.0
    %1051 = vmatpush2.msra.mxu0 0.0
    %1052 = vmatprep.subr.mxu0 0.0
    %1053 = vmatpush2.msra.mxu0 0.0
    %1054 = vmatprep.mubr.f32.mxu0 0.0
    %1055 = vmatmul.mubr.f32.gmra.mxu0 %v988
    %v1056 = vpop.f32.mrf.mxu0
    %v1057 = vadd.f32 0.0, %v1056
    %v1058 = vpop.f32.mrf.mxu0
    %1059 = vdwg.mxu0
    %vm1060 = vcmp.ge.f32.partialorder %v1057, 0.0
    %v1061 = vmul.f32 %v1057, 0.2
    %v1062 = vsel %vm1060, %v1057, %v1061
    %vm1063 = vcmask 123904
    %1064 = vst.msk [vmem:[#allocation5] sm:$0x3] %vm1063, %v1062
    // Predicated region
    $region18: #{tpu_custom_call.1} parent=1 // pred_check
      _
    $region19: #{tpu_custom_call.1} parent=1 // pred_check_branch
      %1066 = sbr.rel (0) target = $region21
    $region20: #{tpu_custom_call.1} parent=1 // pred_region
      %s1068 = ssub.s32 32, 32
      %1069 = vsyncadd [#allocation4], %s1068
      %s1071 = sshll.u32 [#allocation5], 4
      %s1072 = int_to_ptr.vmem [resolvable:$true] %s1071
      %1074 = dma.vmem_to_hbm [thread:$0]  %s1072, 32, %s3, [#allocation4]
    $region21: #{tpu_custom_call.1} parent=1 // pred_fallthru
      _
    // Predicated region
    $region22: #{tpu_custom_call.1} parent=1 // pred_check
      _
    $region23: #{tpu_custom_call.1} parent=1 // pred_check_branch
      %1076 = sbr.rel (0) target = $region25
    $region24: #{tpu_custom_call.1} parent=1 // pred_region
      %1077 = dma.done [#allocation4], 32
    $region25: #{tpu_custom_call.1} parent=1 // pred_fallthru
      _
    %1078 = vsyncpa [#allocation3], 1
    %1079 = vsyncpa [#allocation4], 1

</llo_original>
